<compile_context>
chip_gen: v7x
topology: tpu7x:2x2x1
jax: 0.10.0
libtpu: 0.0.40
codegen_flags: <defaults>
</compile_context>

<pallas_src>
import jax
import jax.numpy as jnp
from jax.experimental import pallas as pl
from jax.experimental.pallas import tpu as pltpu

# Rows per grid step.  Multiple of 8 (sublane granularity).  With m=128 this is
# ~5 MiB of double-buffered VMEM (3 inputs + 2 outputs), comfortably inside the
# default scoped VMEM limit on v5e/v6e/v7x.
_TILE_N = 1024


def _sample_kernel(low_ref, log_scale_ref, u_ref, out_ref):
    """Sample-only variant: out = low + u * exp(log_scale)."""
    out_ref[...] = low_ref[...] + u_ref[...] * jnp.exp(log_scale_ref[...])


def _sample_logprob_kernel(low_ref, log_scale_ref, u_ref, out_ref, lp_ref):
    """Training variant: also emit log_prob = -log(scale) = -log_scale."""
    ls = log_scale_ref[...]
    out_ref[...] = low_ref[...] + u_ref[...] * jnp.exp(ls)
    lp_ref[...] = -ls


def _call_kernel(low2, log_scale2, u2, with_log_prob):
    """Dispatch the tiled pallas_call over (n, m) f32 arrays."""
    n, m = low2.shape
    # Use the full extent when the array is smaller than a tile; otherwise a
    # multiple-of-8 tile (Pallas masks the ragged last block automatically).
    tile_n = n if n <= _TILE_N else _TILE_N
    grid = (pl.cdiv(n, tile_n),)
    blk = pl.BlockSpec((tile_n, m), lambda i: (i, 0))

    if with_log_prob:
        kernel = _sample_logprob_kernel
        out_shape = (jax.ShapeDtypeStruct((n, m), jnp.float32),
                     jax.ShapeDtypeStruct((n, m), jnp.float32))
        out_specs = (blk, blk)
    else:
        kernel = _sample_kernel
        out_shape = jax.ShapeDtypeStruct((n, m), jnp.float32)
        out_specs = blk

    return pl.pallas_call(
        kernel,
        out_shape=out_shape,
        grid=grid,
        in_specs=[blk, blk, blk],
        out_specs=out_specs,
        compiler_params=pltpu.CompilerParams(
            dimension_semantics=("parallel",),
        ),
    )(low2, log_scale2, u2)


def uniform_layer_forward(x, key=None, deterministic=False, pretrain=False,
                          training=True):
    """JAX/Pallas equivalent of UniformLayer.forward.

    Returns (out, log_prob); log_prob is None unless sampling in training mode
    (mirrors the module's self.log_prob side channel).
    """
    x = jnp.asarray(x, jnp.float32)
    if x.ndim == 1:
        x = x.reshape(-1, 1)

    lead_shape = x.shape[:-1]
    m = x.shape[-1] // 2

    if deterministic:
        return x[..., :m], None

    if m == 0:
        # Degenerate case (e.g. 1-D input -> two_m=1, m=0): zero-width outputs.
        empty = jnp.zeros(lead_shape + (0,), jnp.float32)
        return empty, (empty if (training and not pretrain) else None)

    if key is None:
        key = jax.random.PRNGKey(0)

    # Split low / log_scale at the XLA level (lane-dense (n, m) streams into the
    # kernel; the DMA does the split for free).
    low2 = x[..., :m].reshape(-1, m)
    log_scale2 = x[..., m:2 * m].reshape(-1, m)
    n = low2.shape[0]

    # Stateless uniform noise in [0, 1); portable to interpret mode and TPU.
    u2 = jax.random.uniform(key, (n, m), dtype=jnp.float32)

    with_log_prob = bool(training) and not pretrain
    if with_log_prob:
        out2, lp2 = _call_kernel(low2, log_scale2, u2, True)
        return (out2.reshape(lead_shape + (m,)),
                lp2.reshape(lead_shape + (m,)))

    # pretrain=True corresponds to rsample(): identical forward numerics
    # (reparameterized sample); the distinction only matters for autodiff.
    out2 = _call_kernel(low2, log_scale2, u2, False)
    return out2.reshape(lead_shape + (m,)), None


if __name__ == "__main__":
    key = jax.random.PRNGKey(0)
    batch, m = 8, 128                      # x: (8, 2*m) = (8, 256)
    k1, k2, k3 = jax.random.split(key, 3)
    low = jax.random.normal(k1, (batch, m), dtype=jnp.float32)
    log_scale = 0.1 * jax.random.normal(k2, (batch, m), dtype=jnp.float32)
    x = jnp.concatenate([low, log_scale], axis=-1)

    # Stochastic path (training): sample + log_prob (two-output kernel variant).
    out, log_prob = uniform_layer_forward(x, key=k3, training=True)
    out = jax.block_until_ready(out)
    log_prob = jax.block_until_ready(log_prob)

    # Eval path: sample only (single-output kernel variant), no log_prob.
    out_eval, lp_eval = uniform_layer_forward(x, key=k3, training=False)
    out_eval = jax.block_until_ready(out_eval)
    assert lp_eval is None

    # Deterministic path: returns the lower bound (pure slice, no kernel).
    det_out, _ = uniform_layer_forward(x, deterministic=True)
    det_out = jax.block_until_ready(det_out)

    # Sanity checks of the uniform-sampling semantics.
    scale = jnp.exp(log_scale)
    assert out.shape == (batch, m)
    assert log_prob.shape == (batch, m)
    assert bool(jnp.all(out >= low)), "sample below lower bound"
    assert bool(jnp.all(out < low + scale)), "sample above upper bound"
    assert bool(jnp.allclose(log_prob, -log_scale, atol=1e-6)), "bad log_prob"
    assert bool(jnp.allclose(det_out, low)), "deterministic path mismatch"
    assert bool(jnp.allclose(out_eval, out, atol=1e-6)), "eval/train sample mismatch"

    print("KERNEL_OK")
</pallas_src>

<mosaic_0001>
module attributes {stable_mosaic.version = 11 : i64} {
  func.func @_sample_logprob_kernel(%arg0: i32, %arg1: memref<8x128xf32, #tpu.memory_space<vmem>>, %arg2: memref<8x128xf32, #tpu.memory_space<vmem>>, %arg3: memref<8x128xf32, #tpu.memory_space<vmem>>, %arg4: memref<8x128xf32, #tpu.memory_space<vmem>>, %arg5: memref<8x128xf32, #tpu.memory_space<vmem>>) attributes {dimension_semantics = [#tpu.dimension_semantics<parallel>], iteration_bounds = array<i64: 1>, scalar_prefetch = 0 : i64, scratch_operands = 0 : i64, tpu.core_type = #tpu.core_type<tc>, window_params = [{transform_indices = @transform_0, window_bounds = array<i64: 8, 128>}, {transform_indices = @transform_1, window_bounds = array<i64: 8, 128>}, {transform_indices = @transform_2, window_bounds = array<i64: 8, 128>}, {transform_indices = @transform_3, window_bounds = array<i64: 8, 128>}, {transform_indices = @transform_4, window_bounds = array<i64: 8, 128>}]} {
    %c0 = arith.constant 0 : index
    %c0_0 = arith.constant 0 : index
    %0 = vector.load %arg2[%c0, %c0_0] : memref<8x128xf32, #tpu.memory_space<vmem>>, vector<8x128xf32>
    %c0_1 = arith.constant 0 : index
    %c0_2 = arith.constant 0 : index
    %1 = vector.load %arg1[%c0_1, %c0_2] : memref<8x128xf32, #tpu.memory_space<vmem>>, vector<8x128xf32>
    %c0_3 = arith.constant 0 : index
    %c0_4 = arith.constant 0 : index
    %2 = vector.load %arg3[%c0_3, %c0_4] : memref<8x128xf32, #tpu.memory_space<vmem>>, vector<8x128xf32>
    %3 = math.exp %0 : vector<8x128xf32>
    %4 = arith.mulf %2, %3 : vector<8x128xf32>
    %5 = arith.addf %1, %4 : vector<8x128xf32>
    %c0_5 = arith.constant 0 : index
    %c0_6 = arith.constant 0 : index
    %6 = vector.load %arg4[%c0_5, %c0_6] : memref<8x128xf32, #tpu.memory_space<vmem>>, vector<8x128xf32>
    tpu.vector_store %arg4[%c0_5, %c0_6], %5 {strides = array<i32>} : memref<8x128xf32, #tpu.memory_space<vmem>>, vector<8x128xf32>,
    %cst = arith.constant 0.000000e+00 : f32
    %7 = vector.broadcast %cst : f32 to vector<8x128xf32>
    %8 = arith.subf %7, %0 : vector<8x128xf32>
    %c0_7 = arith.constant 0 : index
    %c0_8 = arith.constant 0 : index
    %9 = vector.load %arg5[%c0_7, %c0_8] : memref<8x128xf32, #tpu.memory_space<vmem>>, vector<8x128xf32>
    tpu.vector_store %arg5[%c0_7, %c0_8], %8 {strides = array<i32>} : memref<8x128xf32, #tpu.memory_space<vmem>>, vector<8x128xf32>,
    return
  }
  func.func @transform_0(%arg0: i32) -> (i32, i32) {
    %c0_i32 = arith.constant 0 : i32
    %c0_i32_0 = arith.constant 0 : i32
    return %arg0, %c0_i32 : i32, i32
  }
  func.func @transform_1(%arg0: i32) -> (i32, i32) {
    %c0_i32 = arith.constant 0 : i32
    %c0_i32_0 = arith.constant 0 : i32
    return %arg0, %c0_i32 : i32, i32
  }
  func.func @transform_2(%arg0: i32) -> (i32, i32) {
    %c0_i32 = arith.constant 0 : i32
    %c0_i32_0 = arith.constant 0 : i32
    return %arg0, %c0_i32 : i32, i32
  }
  func.func @transform_3(%arg0: i32) -> (i32, i32) {
    %c0_i32 = arith.constant 0 : i32
    %c0_i32_0 = arith.constant 0 : i32
    return %arg0, %c0_i32 : i32, i32
  }
  func.func @transform_4(%arg0: i32) -> (i32, i32) {
    %c0_i32 = arith.constant 0 : i32
    %c0_i32_0 = arith.constant 0 : i32
    return %arg0, %c0_i32 : i32, i32
  }
}

</mosaic_0001>

<llo_original>
// kernel: tpu_custom_call.1
$region0: #{tpu_custom_call.1}
  #allocation0 [shape = 'u32[]', space=smem, size = 0x4, offset = 0x4, fixed_abs, tag = 'smem constant byte address 0x4 - core index']
  #allocation1 [shape = 'u32[144,128]{1,0:T(1,128)}', space=vmem, size = 0x12000, scoped, tag = 'internal scratch']
  %s0 = inlined_call_operand.hbm [shape: f32[8,128], index: 0, kind: input, shape index: {}]
  %s1 = inlined_call_operand.hbm [shape: f32[8,128], index: 1, kind: input, shape index: {}]
  %s2 = inlined_call_operand.hbm [shape: f32[8,128], index: 2, kind: input, shape index: {}]
  %s3 = inlined_call_operand.hbm [shape: f32[8,128], index: 3, kind: output, shape index: {0}]
  %s4 = inlined_call_operand.hbm [shape: f32[8,128], index: 4, kind: output, shape index: {1}]
  %5 = xla_tuple %s3, %s4
  %s6 = sld [smem:[#allocation0]]
  $region42: #{tpu_custom_call.1} parent=0
    _
  %s8 = ssub.s32 1, %s6
  %s9 = scalar_select 0, %s8, %s6
  $region1: #{tpu_custom_call.1} parent=0
    #allocation2 [shape = 'u8[4096]{0}', space=vmem, size = 0x1000, scoped, tag = 'input window, operand 0, single buffered']
    #allocation3 [shape = 's32[1]{0}', space=sflag, size = 0x4, scoped, tag = 'scoped memory for tpu_custom_call.1']
    #allocation4 [shape = 's32[1]{0}', space=sflag, size = 0x4, scoped, tag = 'scoped memory for tpu_custom_call.1']
    #allocation5 [shape = 'u8[4096]{0}', space=vmem, size = 0x1000, scoped, tag = 'input window, operand 1, single buffered']
    #allocation6 [shape = 's32[1]{0}', space=sflag, size = 0x4, scoped, tag = 'scoped memory for tpu_custom_call.1']
    #allocation7 [shape = 'u8[4096]{0}', space=vmem, size = 0x1000, scoped, tag = 'input window, operand 2, single buffered']
    #allocation8 [shape = 'u8[4096]{0}', space=vmem, size = 0x1000, scoped, tag = 'output window, operand 0, single buffered']
    #allocation9 [shape = 'u8[4096]{0}', space=vmem, size = 0x1000, scoped, tag = 'output window, operand 1, single buffered']
    #allocation10 [shape = 's32[1]{0}', space=sflag, size = 0x4, scoped, tag = 'scoped memory for tpu_custom_call.1']
    %10 = vsyncpa [#allocation3], 0
    %11 = vsyncpa [#allocation6], 0
    %12 = vsyncpa [#allocation4], 0
    %13 = vsyncpa [#allocation10], 0
    // Predicated region
    $region2: #{tpu_custom_call.1} parent=1 // pred_check
      _
    $region3: #{tpu_custom_call.1} parent=1 // pred_check_branch
      %15 = sbr.rel (0) target = $region5
    $region4: #{tpu_custom_call.1} parent=1 // pred_region
      %s17 = ssub.s32 128, 128
      %18 = vsyncadd [#allocation3], %s17
      %s20 = sshll.u32 [#allocation2], 4
      %s21 = int_to_ptr.vmem [resolvable:$true] %s20
      %23 = dma.hbm_to_vmem [thread:$0]  %s0, 128, %s21, [#allocation3]
    $region5: #{tpu_custom_call.1} parent=1 // pred_fallthru
      _
    // Predicated region
    $region6: #{tpu_custom_call.1} parent=1 // pred_check
      _
    $region7: #{tpu_custom_call.1} parent=1 // pred_check_branch
      %25 = sbr.rel (0) target = $region9
    $region8: #{tpu_custom_call.1} parent=1 // pred_region
      %s27 = ssub.s32 128, 128
      %28 = vsyncadd [#allocation6], %s27
      %s30 = sshll.u32 [#allocation5], 4
      %s31 = int_to_ptr.vmem [resolvable:$true] %s30
      %33 = dma.hbm_to_vmem [thread:$0]  %s1, 128, %s31, [#allocation6]
    $region9: #{tpu_custom_call.1} parent=1 // pred_fallthru
      _
    // Predicated region
    $region10: #{tpu_custom_call.1} parent=1 // pred_check
      _
    $region11: #{tpu_custom_call.1} parent=1 // pred_check_branch
      %35 = sbr.rel (0) target = $region13
    $region12: #{tpu_custom_call.1} parent=1 // pred_region
      %s37 = ssub.s32 128, 128
      %38 = vsyncadd [#allocation6], %s37
      %s40 = sshll.u32 [#allocation7], 4
      %s41 = int_to_ptr.vmem [resolvable:$true] %s40
      %43 = dma.hbm_to_vmem [thread:$0]  %s2, 128, %s41, [#allocation6]
    $region13: #{tpu_custom_call.1} parent=1 // pred_fallthru
      _
    // Predicated region
    $region14: #{tpu_custom_call.1} parent=1 // pred_check
      _
    $region15: #{tpu_custom_call.1} parent=1 // pred_check_branch
      %45 = sbr.rel (0) target = $region17
    $region16: #{tpu_custom_call.1} parent=1 // pred_region
      %46 = dma.done [#allocation3], 128
    $region17: #{tpu_custom_call.1} parent=1 // pred_fallthru
      _
    // Predicated region
    $region18: #{tpu_custom_call.1} parent=1 // pred_check
      _
    $region19: #{tpu_custom_call.1} parent=1 // pred_check_branch
      %48 = sbr.rel (0) target = $region21
    $region20: #{tpu_custom_call.1} parent=1 // pred_region
      %49 = dma.done [#allocation6], 128
    $region21: #{tpu_custom_call.1} parent=1 // pred_fallthru
      _
    // Predicated region
    $region22: #{tpu_custom_call.1} parent=1 // pred_check
      _
    $region23: #{tpu_custom_call.1} parent=1 // pred_check_branch
      %51 = sbr.rel (0) target = $region25
    $region24: #{tpu_custom_call.1} parent=1 // pred_region
      %52 = dma.done [#allocation6], 128
    $region25: #{tpu_custom_call.1} parent=1 // pred_fallthru
      _
    %v53 = vld [vmem:[#allocation5] sm:$0xff]
    %v54 = vld [vmem:[#allocation2] sm:$0xff]
    %v55 = vld [vmem:[#allocation7] sm:$0xff]
    %v56 = vmul.f32 %v53, 1.442695
    %v57 = vpow.pop %v56
    %v58 = vmul.f32 %v55, %v57
    %v59 = vadd.f32 %v54, %v58
    %60 = vst [vmem:[#allocation8] sm:$0xff] %v59
    %v61 = vsub.f32 0.0, %v53
    %62 = vst [vmem:[#allocation9] sm:$0xff] %v61
    // Predicated region
    $region26: #{tpu_custom_call.1} parent=1 // pred_check
      _
    $region27: #{tpu_custom_call.1} parent=1 // pred_check_branch
      %64 = sbr.rel (0) target = $region29
    $region28: #{tpu_custom_call.1} parent=1 // pred_region
      %s66 = ssub.s32 128, 128
      %67 = vsyncadd [#allocation4], %s66
      %s69 = sshll.u32 [#allocation8], 4
      %s70 = int_to_ptr.vmem [resolvable:$true] %s69
      %72 = dma.vmem_to_hbm [thread:$0]  %s70, 128, %s3, [#allocation4]
    $region29: #{tpu_custom_call.1} parent=1 // pred_fallthru
      _
    // Predicated region
    $region30: #{tpu_custom_call.1} parent=1 // pred_check
      _
    $region31: #{tpu_custom_call.1} parent=1 // pred_check_branch
      %74 = sbr.rel (0) target = $region33
    $region32: #{tpu_custom_call.1} parent=1 // pred_region
      %s76 = ssub.s32 128, 128
      %77 = vsyncadd [#allocation10], %s76
      %s79 = sshll.u32 [#allocation9], 4
      %s80 = int_to_ptr.vmem [resolvable:$true] %s79
      %82 = dma.vmem_to_hbm [thread:$0]  %s80, 128, %s4, [#allocation10]
    $region33: #{tpu_custom_call.1} parent=1 // pred_fallthru
      _
    // Predicated region
    $region34: #{tpu_custom_call.1} parent=1 // pred_check
      _
    $region35: #{tpu_custom_call.1} parent=1 // pred_check_branch
      %84 = sbr.rel (0) target = $region37
    $region36: #{tpu_custom_call.1} parent=1 // pred_region
      %85 = dma.done [#allocation4], 128
    $region37: #{tpu_custom_call.1} parent=1 // pred_fallthru
      _
    // Predicated region
    $region38: #{tpu_custom_call.1} parent=1 // pred_check
      _
    $region39: #{tpu_custom_call.1} parent=1 // pred_check_branch
      %87 = sbr.rel (0) target = $region41
    $region40: #{tpu_custom_call.1} parent=1 // pred_region
      %88 = dma.done [#allocation10], 128
    $region41: #{tpu_custom_call.1} parent=1 // pred_fallthru
      _
    %89 = vsyncpa [#allocation3], 1
    %90 = vsyncpa [#allocation6], 1
    %91 = vsyncpa [#allocation4], 1
    %92 = vsyncpa [#allocation10], 1

</llo_original>
